<compile_context>
chip_gen: v5e
topology: v5e:2x2
jax: 0.10.0
libtpu: 0.0.40
codegen_flags: <defaults>
</compile_context>

<pallas_src>
import jax
import jax.numpy as jnp
from jax.experimental import pallas as pl
from jax.experimental.pallas import tpu as pltpu


# ----------------------------------------------------------------------------
# Fused kernel:  h = silu(x @ W1 + b1)   (recomputed per output tile; cheap)
#                y_tile = h @ W2[:, tile] + b2[tile]
# ----------------------------------------------------------------------------
def _time_embedding_kernel(x_ref, w1_ref, b1_ref, w2_ref, b2_ref, o_ref):
    w_dtype = w1_ref.dtype
    x = x_ref[...].astype(w_dtype)
    # bf16 x bf16 -> f32 accumulation on the MXU; streamed weights are never
    # upcast to f32 (this kernel is pure HBM weight streaming).
    h = jnp.dot(x, w1_ref[...], preferred_element_type=jnp.float32)
    h = h + b1_ref[...].astype(jnp.float32)
    h = h * jax.nn.sigmoid(h)                                    # SiLU (f32, EUP)
    y = jnp.dot(h.astype(w2_ref.dtype), w2_ref[...],
                preferred_element_type=jnp.float32)
    o_ref[...] = (y + b2_ref[...].astype(jnp.float32)).astype(o_ref.dtype)


# ----------------------------------------------------------------------------
# Tile selection: VMEM byte budget for the double-buffered W2 column panel.
# ----------------------------------------------------------------------------
_W2_PANEL_BUDGET = 10 * 1024 * 1024   # bytes for the 2x-buffered W2 panel
_MAX_TILES = 8                        # per-step overhead ~0.35us; don't over-tile


def _pick_out_tile(hidden, out_dim, w_itemsize):
    """Lane-dense (multiple-of-128) tile of the second linear's output columns."""
    if out_dim % 128 != 0:
        # Odd widths: keep a single exact tile (only plausible at tiny n_embd).
        return out_dim
    divisors = [t for t in range(128, out_dim + 1, 128) if out_dim % t == 0]
    divisors.sort(reverse=True)                         # largest first
    fits = [t for t in divisors if 2 * hidden * t * w_itemsize <= _W2_PANEL_BUDGET]
    if not fits:
        return 128                                      # budget is best-effort
    multi = [t for t in fits if out_dim // t >= 2]      # lets DMA overlap compute
    pool = multi if multi else fits
    capped = [t for t in pool if out_dim // t <= _MAX_TILES]
    return (capped or pool)[0]


# ----------------------------------------------------------------------------
# pallas_call wrapper
# ----------------------------------------------------------------------------
def _time_embedding_impl(x, w1, b1, w2, b2, *, single_buffer_resident):
    B, D = x.shape
    H = w1.shape[1]            # 4 * n_embd (hidden width)
    O = w2.shape[1]            # 4 * n_embd (output width)

    tile_out = _pick_out_tile(H, O, w2.dtype.itemsize)
    n_tiles = O // tile_out

    def resident_spec(block_shape):
        # Constant block index => fetched once, stays resident in VMEM.
        if single_buffer_resident:
            return pl.BlockSpec(block_shape, lambda j: (0, 0),
                                pipeline_mode=pl.Buffered(1))
        return pl.BlockSpec(block_shape, lambda j: (0, 0))

    out_itemsize = jnp.dtype(x.dtype).itemsize
    w1_bufs = 1 if single_buffer_resident else 2
    vmem_est = (
        2 * H * tile_out * w2.dtype.itemsize             # W2 panel (double-buffered)
        + w1_bufs * D * H * w1.dtype.itemsize            # resident W1
        + w1_bufs * (B * D + 2 * H) * 4                  # x, b1 (f32 upper bound)
        + 2 * (B * tile_out * out_itemsize + tile_out * 4)  # out tile + b2 tile
        + B * H * 4                                      # hidden activation
    )
    vmem_limit = int(min(64 * 1024 * 1024,
                         max(32 * 1024 * 1024, int(1.25 * vmem_est) + (2 << 20))))

    flops = 2 * B * D * H * n_tiles + 2 * B * H * O
    transcendentals = B * H * n_tiles
    bytes_accessed = int(
        x.size * x.dtype.itemsize
        + w1.size * w1.dtype.itemsize + b1.size * b1.dtype.itemsize
        + w2.size * w2.dtype.itemsize + b2.size * b2.dtype.itemsize
        + B * O * out_itemsize)

    return pl.pallas_call(
        _time_embedding_kernel,
        out_shape=jax.ShapeDtypeStruct((B, O), x.dtype),
        grid=(n_tiles,),
        in_specs=[
            resident_spec((B, D)),                            # x        (resident)
            resident_spec((D, H)),                            # W1       (resident)
            resident_spec((1, H)),                            # b1       (resident)
            pl.BlockSpec((H, tile_out), lambda j: (0, j)),    # W2 column panel
            pl.BlockSpec((1, tile_out), lambda j: (0, j)),    # b2 tile
        ],
        out_specs=pl.BlockSpec((B, tile_out), lambda j: (0, j)),
        compiler_params=pltpu.CompilerParams(
            dimension_semantics=("parallel",),   # no cross-step state -> v7x 2-TC
            vmem_limit_bytes=vmem_limit),
        cost_estimate=pl.CostEstimate(
            flops=int(flops),
            transcendentals=int(transcendentals),
            bytes_accessed=bytes_accessed),
    )(x, w1, b1.reshape(1, H), w2, b2.reshape(1, O))


def time_embedding(x, w1, b1, w2, b2):
    """Fused TimeEmbedding forward.

    x: (B, n_embd); w1: (n_embd, 4n) == linear_1.weight.T; b1: (4n,);
    w2: (4n, 4n) == linear_2.weight.T; b2: (4n,).
    Weights are streamed in their incoming dtype (pass bf16 for half the HBM bytes).
    """
    if not hasattr(pl, "Buffered"):
        return _time_embedding_impl(x, w1, b1, w2, b2, single_buffer_resident=False)
    try:
        return _time_embedding_impl(x, w1, b1, w2, b2, single_buffer_resident=True)
    except Exception:
        # Some Pallas builds reject pipeline_mode=Buffered(1); the default
        # double-buffered resident specs are still correct, just use more VMEM.
        return _time_embedding_impl(x, w1, b1, w2, b2, single_buffer_resident=False)


# ----------------------------------------------------------------------------
# Pure-JAX reference (mirrors the PyTorch TimeEmbedding.forward) and self-test
# ----------------------------------------------------------------------------
def reference_forward(x, w1, b1, w2, b2):
    xf = x.astype(jnp.float32)
    h = xf @ w1.astype(jnp.float32) + b1.astype(jnp.float32)
    h = h * jax.nn.sigmoid(h)                 # F.silu
    return h @ w2.astype(jnp.float32) + b2.astype(jnp.float32)


def _check(B, n_embd, key, tol):
    H = 4 * n_embd
    ks = jax.random.split(key, 5)
    x = jax.random.normal(ks[0], (B, n_embd), jnp.float32)
    # Weights stored (in, out) == torch weight.T; streamed as bf16.
    w1 = (jax.random.normal(ks[1], (n_embd, H), jnp.float32)
          / (n_embd ** 0.5)).astype(jnp.bfloat16)
    b1 = 0.1 * jax.random.normal(ks[2], (H,), jnp.float32)
    w2 = (jax.random.normal(ks[3], (H, H), jnp.float32)
          / (H ** 0.5)).astype(jnp.bfloat16)
    b2 = 0.1 * jax.random.normal(ks[4], (H,), jnp.float32)

    out = jax.block_until_ready(time_embedding(x, w1, b1, w2, b2))
    assert out.shape == (B, H), out.shape
    ref = jax.block_until_ready(reference_forward(x, w1, b1, w2, b2))
    err = float(jnp.max(jnp.abs(out.astype(jnp.float32) - ref)))
    if err > tol:
        raise AssertionError(
            f"Pallas mismatch (B={B}, n_embd={n_embd}): max abs err {err}")


if __name__ == "__main__":
    key = jax.random.PRNGKey(0)
    k1, k2 = jax.random.split(key)
    # Small config (single 128-wide output tile).
    _check(B=2, n_embd=32, key=k1, tol=5e-2)
    # SD-like width (n_embd=320 -> hidden 1280): exercises the multi-tile
    # (n_tiles >= 2, lane-dense 640-wide W2 panels) streaming path.
    _check(B=2, n_embd=320, key=k2, tol=5e-2)
    print("KERNEL_OK")
</pallas_src>

<mosaic_0001>
module attributes {stable_mosaic.version = 11 : i64} {
  func.func @_time_embedding_kernel(%arg0: i32, %arg1: memref<2x32xf32, #tpu.memory_space<vmem>>, %arg2: memref<32x128xbf16, #tpu.memory_space<vmem>>, %arg3: memref<1x128xf32, #tpu.memory_space<vmem>>, %arg4: memref<128x128xbf16, #tpu.memory_space<vmem>>, %arg5: memref<1x128xf32, #tpu.memory_space<vmem>>, %arg6: memref<2x128xf32, #tpu.memory_space<vmem>>) attributes {dimension_semantics = [#tpu.dimension_semantics<parallel>], iteration_bounds = array<i64: 1>, scalar_prefetch = 0 : i64, scratch_operands = 0 : i64, tpu.core_type = #tpu.core_type<tc>, window_params = [{pipeline_mode = #tpu.pipeline_mode<synchronous>, transform_indices = @transform_0, window_bounds = array<i64: 2, 32>}, {pipeline_mode = #tpu.pipeline_mode<synchronous>, transform_indices = @transform_1, window_bounds = array<i64: 32, 128>}, {pipeline_mode = #tpu.pipeline_mode<synchronous>, transform_indices = @transform_2, window_bounds = array<i64: 1, 128>}, {transform_indices = @transform_3, window_bounds = array<i64: 128, 128>}, {transform_indices = @transform_4, window_bounds = array<i64: 1, 128>}, {transform_indices = @transform_5, window_bounds = array<i64: 2, 128>}]} {
    %c0 = arith.constant 0 : index
    %c0_0 = arith.constant 0 : index
    %0 = vector.load %arg1[%c0, %c0_0] : memref<2x32xf32, #tpu.memory_space<vmem>>, vector<2x32xf32>
    %1 = arith.truncf %0 : vector<2x32xf32> to vector<2x32xbf16>
    %c0_1 = arith.constant 0 : index
    %c0_2 = arith.constant 0 : index
    %2 = vector.load %arg2[%c0_1, %c0_2] : memref<32x128xbf16, #tpu.memory_space<vmem>>, vector<32x128xbf16>
    %cst = arith.constant dense<0.000000e+00> : vector<2x128xf32>
    %3 = tpu.matmul %1, %2, %cst {dimension_numbers = #tpu.dot_dimension_numbers<[1], [0], [0], [1], [0, 0, 1, 1], [], []>} : vector<2x32xbf16>, vector<32x128xbf16>, vector<2x128xf32> -> vector<2x128xf32>
    %c0_3 = arith.constant 0 : index
    %c0_4 = arith.constant 0 : index
    %4 = vector.load %arg3[%c0_3, %c0_4] : memref<1x128xf32, #tpu.memory_space<vmem>>, vector<1x128xf32>
    %5 = vector.broadcast %4 : vector<1x128xf32> to vector<2x128xf32>
    %6 = arith.addf %3, %5 : vector<2x128xf32>
    %7 = arith.negf %6 : vector<2x128xf32>
    %8 = math.exp %7 : vector<2x128xf32>
    %cst_5 = arith.constant 1.000000e+00 : f32
    %9 = vector.broadcast %cst_5 : f32 to vector<2x128xf32>
    %10 = arith.addf %9, %8 : vector<2x128xf32>
    %11 = arith.divf %9, %10 : vector<2x128xf32>
    %12 = arith.mulf %6, %11 : vector<2x128xf32>
    %13 = arith.truncf %12 : vector<2x128xf32> to vector<2x128xbf16>
    %c0_6 = arith.constant 0 : index
    %c0_7 = arith.constant 0 : index
    %14 = vector.load %arg4[%c0_6, %c0_7] : memref<128x128xbf16, #tpu.memory_space<vmem>>, vector<128x128xbf16>
    %cst_8 = arith.constant dense<0.000000e+00> : vector<2x128xf32>
    %15 = tpu.matmul %13, %14, %cst_8 {dimension_numbers = #tpu.dot_dimension_numbers<[1], [0], [0], [1], [0, 0, 1, 1], [], []>} : vector<2x128xbf16>, vector<128x128xbf16>, vector<2x128xf32> -> vector<2x128xf32>
    %c0_9 = arith.constant 0 : index
    %c0_10 = arith.constant 0 : index
    %16 = vector.load %arg5[%c0_9, %c0_10] : memref<1x128xf32, #tpu.memory_space<vmem>>, vector<1x128xf32>
    %17 = vector.broadcast %16 : vector<1x128xf32> to vector<2x128xf32>
    %18 = arith.addf %15, %17 : vector<2x128xf32>
    %c0_11 = arith.constant 0 : index
    %c0_12 = arith.constant 0 : index
    %19 = vector.load %arg6[%c0_11, %c0_12] : memref<2x128xf32, #tpu.memory_space<vmem>>, vector<2x128xf32>
    tpu.vector_store %arg6[%c0_11, %c0_12], %18 {strides = array<i32>} : memref<2x128xf32, #tpu.memory_space<vmem>>, vector<2x128xf32>,
    return
  }
  func.func @transform_0(%arg0: i32) -> (i32, i32) {
    %c0_i32 = arith.constant 0 : i32
    %c0_i32_0 = arith.constant 0 : i32
    %c0_i32_1 = arith.constant 0 : i32
    return %c0_i32, %c0_i32_0 : i32, i32
  }
  func.func @transform_1(%arg0: i32) -> (i32, i32) {
    %c0_i32 = arith.constant 0 : i32
    %c0_i32_0 = arith.constant 0 : i32
    %c0_i32_1 = arith.constant 0 : i32
    return %c0_i32, %c0_i32_0 : i32, i32
  }
  func.func @transform_2(%arg0: i32) -> (i32, i32) {
    %c0_i32 = arith.constant 0 : i32
    %c0_i32_0 = arith.constant 0 : i32
    %c0_i32_1 = arith.constant 0 : i32
    return %c0_i32, %c0_i32_0 : i32, i32
  }
  func.func @transform_3(%arg0: i32) -> (i32, i32) {
    %c0_i32 = arith.constant 0 : i32
    %c0_i32_0 = arith.constant 0 : i32
    return %c0_i32, %arg0 : i32, i32
  }
  func.func @transform_4(%arg0: i32) -> (i32, i32) {
    %c0_i32 = arith.constant 0 : i32
    %c0_i32_0 = arith.constant 0 : i32
    return %c0_i32, %arg0 : i32, i32
  }
  func.func @transform_5(%arg0: i32) -> (i32, i32) {
    %c0_i32 = arith.constant 0 : i32
    %c0_i32_0 = arith.constant 0 : i32
    return %c0_i32, %arg0 : i32, i32
  }
}

module attributes {stable_mosaic.version = 11 : i64} {
  func.func @_time_embedding_kernel(%arg0: i32, %arg1: memref<2x32xf32, #tpu.memory_space<vmem>>, %arg2: memref<32x128xbf16, #tpu.memory_space<vmem>>, %arg3: memref<1x128xf32, #tpu.memory_space<vmem>>, %arg4: memref<128x128xbf16, #tpu.memory_space<vmem>>, %arg5: memref<1x128xf32, #tpu.memory_space<vmem>>, %arg6: memref<2x128xf32, #tpu.memory_space<vmem>>) attributes {dimension_semantics = [#tpu.dimension_semantics<parallel>], iteration_bounds = array<i64: 1>, scalar_prefetch = 0 : i64, scratch_operands = 0 : i64, tpu.core_type = #tpu.core_type<tc>, window_params = [{pipeline_mode = #tpu.pipeline_mode<synchronous>, transform_indices = @transform_0, window_bounds = array<i64: 2, 32>}, {pipeline_mode = #tpu.pipeline_mode<synchronous>, transform_indices = @transform_1, window_bounds = array<i64: 32, 128>}, {pipeline_mode = #tpu.pipeline_mode<synchronous>, transform_indices = @transform_2, window_bounds = array<i64: 1, 128>}, {transform_indices = @transform_3, window_bounds = array<i64: 128, 128>}, {transform_indices = @transform_4, window_bounds = array<i64: 1, 128>}, {transform_indices = @transform_5, window_bounds = array<i64: 2, 128>}]} {
    %c0 = arith.constant 0 : index
    %c0_0 = arith.constant 0 : index
    %0 = vector.load %arg1[%c0, %c0_0] : memref<2x32xf32, #tpu.memory_space<vmem>>, vector<2x32xf32>
    %1 = arith.truncf %0 : vector<2x32xf32> to vector<2x32xbf16>
    %c0_1 = arith.constant 0 : index
    %c0_2 = arith.constant 0 : index
    %2 = vector.load %arg2[%c0_1, %c0_2] : memref<32x128xbf16, #tpu.memory_space<vmem>>, vector<32x128xbf16>
    %cst = arith.constant dense<0.000000e+00> : vector<2x128xf32>
    %3 = tpu.matmul %1, %2, %cst {dimension_numbers = #tpu.dot_dimension_numbers<[1], [0], [0], [1], [0, 0, 1, 1], [], []>} : vector<2x32xbf16>, vector<32x128xbf16>, vector<2x128xf32> -> vector<2x128xf32>
    %c0_3 = arith.constant 0 : index
    %c0_4 = arith.constant 0 : index
    %4 = vector.load %arg3[%c0_3, %c0_4] : memref<1x128xf32, #tpu.memory_space<vmem>>, vector<1x128xf32>
    %5 = vector.broadcast %4 : vector<1x128xf32> to vector<2x128xf32>
    %6 = arith.addf %3, %5 : vector<2x128xf32>
    %7 = arith.negf %6 : vector<2x128xf32>
    %8 = math.exp %7 : vector<2x128xf32>
    %cst_5 = arith.constant 1.000000e+00 : f32
    %9 = vector.broadcast %cst_5 : f32 to vector<2x128xf32>
    %10 = arith.addf %9, %8 : vector<2x128xf32>
    %11 = arith.divf %9, %10 : vector<2x128xf32>
    %12 = arith.mulf %6, %11 : vector<2x128xf32>
    %13 = arith.truncf %12 : vector<2x128xf32> to vector<2x128xbf16>
    %c0_6 = arith.constant 0 : index
    %c0_7 = arith.constant 0 : index
    %14 = vector.load %arg4[%c0_6, %c0_7] : memref<128x128xbf16, #tpu.memory_space<vmem>>, vector<128x128xbf16>
    %cst_8 = arith.constant dense<0.000000e+00> : vector<2x128xf32>
    %15 = tpu.matmul %13, %14, %cst_8 {dimension_numbers = #tpu.dot_dimension_numbers<[1], [0], [0], [1], [0, 0, 1, 1], [], []>} : vector<2x128xbf16>, vector<128x128xbf16>, vector<2x128xf32> -> vector<2x128xf32>
    %c0_9 = arith.constant 0 : index
    %c0_10 = arith.constant 0 : index
    %16 = vector.load %arg5[%c0_9, %c0_10] : memref<1x128xf32, #tpu.memory_space<vmem>>, vector<1x128xf32>
    %17 = vector.broadcast %16 : vector<1x128xf32> to vector<2x128xf32>
    %18 = arith.addf %15, %17 : vector<2x128xf32>
    %c0_11 = arith.constant 0 : index
    %c0_12 = arith.constant 0 : index
    %19 = vector.load %arg6[%c0_11, %c0_12] : memref<2x128xf32, #tpu.memory_space<vmem>>, vector<2x128xf32>
    tpu.vector_store %arg6[%c0_11, %c0_12], %18 {strides = array<i32>} : memref<2x128xf32, #tpu.memory_space<vmem>>, vector<2x128xf32>,
    return
  }
  func.func @transform_0(%arg0: i32) -> (i32, i32) {
    %c0_i32 = arith.constant 0 : i32
    %c0_i32_0 = arith.constant 0 : i32
    %c0_i32_1 = arith.constant 0 : i32
    return %c0_i32, %c0_i32_0 : i32, i32
  }
  func.func @transform_1(%arg0: i32) -> (i32, i32) {
    %c0_i32 = arith.constant 0 : i32
    %c0_i32_0 = arith.constant 0 : i32
    %c0_i32_1 = arith.constant 0 : i32
    return %c0_i32, %c0_i32_0 : i32, i32
  }
  func.func @transform_2(%arg0: i32) -> (i32, i32) {
    %c0_i32 = arith.constant 0 : i32
    %c0_i32_0 = arith.constant 0 : i32
    %c0_i32_1 = arith.constant 0 : i32
    return %c0_i32, %c0_i32_0 : i32, i32
  }
  func.func @transform_3(%arg0: i32) -> (i32, i32) {
    %c0_i32 = arith.constant 0 : i32
    %c0_i32_0 = arith.constant 0 : i32
    return %c0_i32, %arg0 : i32, i32
  }
  func.func @transform_4(%arg0: i32) -> (i32, i32) {
    %c0_i32 = arith.constant 0 : i32
    %c0_i32_0 = arith.constant 0 : i32
    return %c0_i32, %arg0 : i32, i32
  }
  func.func @transform_5(%arg0: i32) -> (i32, i32) {
    %c0_i32 = arith.constant 0 : i32
    %c0_i32_0 = arith.constant 0 : i32
    return %c0_i32, %arg0 : i32, i32
  }
}

</mosaic_0001>

<llo_original>
// kernel: tpu_custom_call.1
$region0: #{tpu_custom_call.1}
  #allocation0 [shape = 'u32[]', space=smem, size = 0x4, offset = 0x4, fixed_abs, tag = 'smem constant byte address 0x4 - core index']
  #allocation1 [shape = 'u32[72,128]{1,0:T(1,128)}', space=vmem, size = 0x9000, scoped, tag = 'internal scratch']
  %s0 = inlined_call_operand.hbm [shape: f32[2,32], index: 0, kind: input, shape index: {}]
  %s1 = inlined_call_operand.hbm [shape: bf16[32,128], index: 1, kind: input, shape index: {}]
  %s2 = inlined_call_operand.vmem [shape: f32[1,128], index: 2, kind: input, shape index: {}]
  %s3 = inlined_call_operand.hbm [shape: bf16[128,128], index: 3, kind: input, shape index: {}]
  %s4 = inlined_call_operand.vmem [shape: f32[1,128], index: 4, kind: input, shape index: {}]
  %s5 = inlined_call_operand.hbm [shape: f32[2,128], index: 5, kind: output, shape index: {}]
  %s6 = sld [smem:[#allocation0]]
  $region42: #{tpu_custom_call.1} parent=0
    _
  %s8 = ssub.s32 1, %s6
  %s9 = scalar_select 0, %s8, %s6
  $region1: #{tpu_custom_call.1} parent=0
    #allocation2 [shape = 'u8[1024]{0}', space=vmem, size = 0x400, scoped, tag = 'input window, operand 0, single buffered']
    #allocation3 [shape = 's32[1]{0}', space=sflag, size = 0x4, scoped, tag = 'scoped memory for tpu_custom_call.1']
    #allocation4 [shape = 's32[1]{0}', space=sflag, size = 0x4, scoped, tag = 'scoped memory for tpu_custom_call.1']
    #allocation5 [shape = 'u8[8192]{0}', space=vmem, size = 0x2000, scoped, tag = 'input window, operand 1, single buffered']
    #allocation6 [shape = 's32[1]{0}', space=sflag, size = 0x4, scoped, tag = 'scoped memory for tpu_custom_call.1']
    #allocation7 [shape = 'u8[32768]{0}', space=vmem, size = 0x8000, scoped, tag = 'input window, operand 3, single buffered']
    #allocation8 [shape = 'u8[1024]{0}', space=vmem, size = 0x400, scoped, tag = 'output window, operand 0, single buffered']
    %10 = vsyncpa [#allocation3], 0
    %11 = vsyncpa [#allocation6], 0
    %12 = vsyncpa [#allocation4], 0
    // Predicated region
    $region2: #{tpu_custom_call.1} parent=1 // pred_check
      _
    $region3: #{tpu_custom_call.1} parent=1 // pred_check_branch
      %14 = sbr.rel (0) target = $region5
    $region4: #{tpu_custom_call.1} parent=1 // pred_region
      %16 = vsyncadd [#allocation3], 0
      %s18 = sshll.u32 %s0, 4
      %s19 = int_to_ptr.hbm [resolvable:$true] %s18
      %s20 = sshll.u32 [#allocation2], 4
      %s21 = int_to_ptr.vmem [resolvable:$true] %s20
      %23 = dma.hbm_to_vmem [thread:$0]  %s19, 32, %s21, [#allocation3]
    $region5: #{tpu_custom_call.1} parent=1 // pred_fallthru
      _
    // Predicated region
    $region6: #{tpu_custom_call.1} parent=1 // pred_check
      _
    $region7: #{tpu_custom_call.1} parent=1 // pred_check_branch
      %25 = sbr.rel (0) target = $region9
    $region8: #{tpu_custom_call.1} parent=1 // pred_region
      %27 = vsyncadd [#allocation6], 0
      %s28 = sshll.u32 %s1, 4
      %s29 = int_to_ptr.hbm [resolvable:$true] %s28
      %s30 = sshll.u32 [#allocation5], 4
      %s31 = int_to_ptr.vmem [resolvable:$true] %s30
      %36 = dma.hbm_to_vmem [thread:$0]  %s29, 256, %s31, [#allocation6], 64, 64, 4
    $region9: #{tpu_custom_call.1} parent=1 // pred_fallthru
      _
    // Predicated region
    $region10: #{tpu_custom_call.1} parent=1 // pred_check
      _
    $region11: #{tpu_custom_call.1} parent=1 // pred_check_branch
      %38 = sbr.rel (0) target = $region13
    $region12: #{tpu_custom_call.1} parent=1 // pred_region
      _
    $region13: #{tpu_custom_call.1} parent=1 // pred_fallthru
      _
    // Predicated region
    $region14: #{tpu_custom_call.1} parent=1 // pred_check
      _
    $region15: #{tpu_custom_call.1} parent=1 // pred_check_branch
      %40 = sbr.rel (0) target = $region17
    $region16: #{tpu_custom_call.1} parent=1 // pred_region
      %42 = vsyncadd [#allocation6], 0
      %s43 = sshll.u32 %s3, 4
      %s44 = int_to_ptr.hbm [resolvable:$true] %s43
      %s45 = sshll.u32 [#allocation7], 4
      %s46 = int_to_ptr.vmem [resolvable:$true] %s45
      %51 = dma.hbm_to_vmem [thread:$0]  %s44, 1024, %s46, [#allocation6], 64, 64, 4
    $region17: #{tpu_custom_call.1} parent=1 // pred_fallthru
      _
    // Predicated region
    $region18: #{tpu_custom_call.1} parent=1 // pred_check
      _
    $region19: #{tpu_custom_call.1} parent=1 // pred_check_branch
      %53 = sbr.rel (0) target = $region21
    $region20: #{tpu_custom_call.1} parent=1 // pred_region
      _
    $region21: #{tpu_custom_call.1} parent=1 // pred_fallthru
      _
    // Predicated region
    $region22: #{tpu_custom_call.1} parent=1 // pred_check
      _
    $region23: #{tpu_custom_call.1} parent=1 // pred_check_branch
      %55 = sbr.rel (0) target = $region25
    $region24: #{tpu_custom_call.1} parent=1 // pred_region
      %57 = dma.done [#allocation3], 32
    $region25: #{tpu_custom_call.1} parent=1 // pred_fallthru
      _
    // Predicated region
    $region26: #{tpu_custom_call.1} parent=1 // pred_check
      _
    $region27: #{tpu_custom_call.1} parent=1 // pred_check_branch
      %59 = sbr.rel (0) target = $region29
    $region28: #{tpu_custom_call.1} parent=1 // pred_region
      %61 = dma.done [#allocation6], 256
    $region29: #{tpu_custom_call.1} parent=1 // pred_fallthru
      _
    // Predicated region
    $region30: #{tpu_custom_call.1} parent=1 // pred_check
      _
    $region31: #{tpu_custom_call.1} parent=1 // pred_check_branch
      %63 = sbr.rel (0) target = $region33
    $region32: #{tpu_custom_call.1} parent=1 // pred_region
      %65 = dma.done [#allocation6], 1024
    $region33: #{tpu_custom_call.1} parent=1 // pred_fallthru
      _
    %v67 = vld [vmem:[#allocation2] sm:$0x3]
    %v68 = vpack.c.bf16 %v67, %v67
    %v69 = vld [vmem:[#allocation5] sm:$0xf]
    %v70 = vld [vmem:[#allocation5 + $0x4] sm:$0xf]
    %v71 = vld [vmem:[#allocation5 + $0x8] sm:$0xf]
    %v72 = vld [vmem:[#allocation5 + $0xc] sm:$0xf]
    %v73 = vld [vmem:[%s2] sm:$0x1]
    %v75 = vperm.slane %v73, 0
    %v81 = vunpack.c.l.b16 %v69
    %v82 = vunpack.c.l.b16 %v70
    %v83 = vunpack.c.l.b16 %v71
    %v84 = vunpack.c.l.b16 %v72
    %v85 = vpack.c.b16 %v82, %v81
    %v86 = vpack.c.b16 %v84, %v83
    %vm89 = vcmask 261120
    %v91 = vsel %vm89, %v68, 0
    %93 = vmatpush.bf16.msra.mxu0 0
    %94 = vmatpush.bf16.msra.mxu0 0
    %95 = vmatpush.bf16.msra.mxu0 0
    %96 = vmatpush.bf16.msra.mxu0 0
    %97 = vmatpush.bf16.msra.mxu0 0
    %98 = vmatpush.bf16.msra.mxu0 0
    %99 = vmatpush.bf16.msra.mxu0 %v86
    %100 = vmatpush.bf16.msra.mxu0 %v85
    %101 = vmatmul.bf16.gmra.mxu0 %v91
    %v102 = vpop.f32.mrf.mxu0
    %v103 = vadd.f32 %v75, %v102
    %v104 = vpop.f32.mrf.mxu0
    %105 = vdwg.mxu0
    %v106 = vxor.u32 %v103, 2147483648
    %v107 = vmul.f32 %v106, 1.442695
    %v108 = vpow.pop %v107
    %v109 = vadd.f32 %v108, 1.0
    %v110 = vrcp.pop %v109
    %v111 = vmul.f32 %v109, %v110
    %v112 = vsub.f32 1.0, %v111
    %v113 = vmul.f32 %v110, %v112
    %v114 = vadd.f32 %v110, %v113
    %vm115 = vweird.f32 %v109
    %vm116 = vweird.f32 %v110
    %vm117 = vmor %vm115, %vm116
    %v118 = vsel %vm117, %v110, %v114
    %v119 = vand.u32 2147483647, %v109
    %vm120 = vcmp.eq.f32.partialorder %v119, 8.507059e+37
    %v121 = vand.u32 %v109, 2147483648
    %v122 = vor.u32 1.1754944e-38, %v121
    %v123 = vsel %vm120, %v122, %v118
    %v124 = vmul.f32 1.0, %v123
    %v125 = vmul.f32 %v103, %v124
    %v126 = vpack.c.bf16 %v125, %v125
    %v127 = vld [vmem:[#allocation7] sm:$0xf]
    %v128 = vld [vmem:[#allocation7 + $0x4] sm:$0xf]
    %v129 = vld [vmem:[#allocation7 + $0x8] sm:$0xf]
    %v130 = vld [vmem:[#allocation7 + $0xc] sm:$0xf]
    %v131 = vld [vmem:[#allocation7 + $0x10] sm:$0xf]
    %v132 = vld [vmem:[#allocation7 + $0x14] sm:$0xf]
    %v133 = vld [vmem:[#allocation7 + $0x18] sm:$0xf]
    %v134 = vld [vmem:[#allocation7 + $0x1c] sm:$0xf]
    %v135 = vld [vmem:[#allocation7 + $0x20] sm:$0xf]
    %v136 = vld [vmem:[#allocation7 + $0x24] sm:$0xf]
    %v137 = vld [vmem:[#allocation7 + $0x28] sm:$0xf]
    %v138 = vld [vmem:[#allocation7 + $0x2c] sm:$0xf]
    %v139 = vld [vmem:[#allocation7 + $0x30] sm:$0xf]
    %v140 = vld [vmem:[#allocation7 + $0x34] sm:$0xf]
    %v141 = vld [vmem:[#allocation7 + $0x38] sm:$0xf]
    %v142 = vld [vmem:[#allocation7 + $0x3c] sm:$0xf]
    %v143 = vld [vmem:[%s4] sm:$0x1]
    %v145 = vperm.slane %v143, 0
    %v163 = vunpack.c.l.b16 %v127
    %v164 = vunpack.c.l.b16 %v128
    %v165 = vunpack.c.l.b16 %v129
    %v166 = vunpack.c.l.b16 %v130
    %v167 = vunpack.c.l.b16 %v131
    %v168 = vunpack.c.l.b16 %v132
    %v169 = vunpack.c.l.b16 %v133
    %v170 = vunpack.c.l.b16 %v134
    %v171 = vunpack.c.l.b16 %v135
    %v172 = vunpack.c.l.b16 %v136
    %v173 = vunpack.c.l.b16 %v137
    %v174 = vunpack.c.l.b16 %v138
    %v175 = vunpack.c.l.b16 %v139
    %v176 = vunpack.c.l.b16 %v140
    %v177 = vunpack.c.l.b16 %v141
    %v178 = vunpack.c.l.b16 %v142
    %v179 = vpack.c.b16 %v164, %v163
    %v180 = vpack.c.b16 %v166, %v165
    %v181 = vpack.c.b16 %v168, %v167
    %v182 = vpack.c.b16 %v170, %v169
    %v183 = vpack.c.b16 %v172, %v171
    %v184 = vpack.c.b16 %v174, %v173
    %v185 = vpack.c.b16 %v176, %v175
    %v186 = vpack.c.b16 %v178, %v177
    %195 = vmatpush.bf16.msra.mxu0 %v186
    %196 = vmatpush.bf16.msra.mxu0 %v185
    %197 = vmatpush.bf16.msra.mxu0 %v184
    %198 = vmatpush.bf16.msra.mxu0 %v183
    %199 = vmatpush.bf16.msra.mxu0 %v182
    %200 = vmatpush.bf16.msra.mxu0 %v181
    %201 = vmatpush.bf16.msra.mxu0 %v180
    %202 = vmatpush.bf16.msra.mxu0 %v179
    %203 = vmatmul.bf16.gmra.mxu0 %v126
    %v204 = vpop.f32.mrf.mxu0
    %v205 = vadd.f32 %v145, %v204
    %v206 = vpop.f32.mrf.mxu0
    %207 = vdwg.mxu0
    %208 = vst [vmem:[#allocation8] sm:$0x3] %v205
    // Predicated region
    $region34: #{tpu_custom_call.1} parent=1 // pred_check
      _
    $region35: #{tpu_custom_call.1} parent=1 // pred_check_branch
      %210 = sbr.rel (0) target = $region37
    $region36: #{tpu_custom_call.1} parent=1 // pred_region
      %212 = vsyncadd [#allocation4], 0
      %s214 = sshll.u32 [#allocation8], 4
      %s215 = int_to_ptr.vmem [resolvable:$true] %s214
      %s216 = sshll.u32 %s5, 4
      %s217 = int_to_ptr.hbm [resolvable:$true] %s216
      %219 = dma.vmem_to_hbm [thread:$0]  %s215, 32, %s217, [#allocation4]
    $region37: #{tpu_custom_call.1} parent=1 // pred_fallthru
      _
    // Predicated region
    $region38: #{tpu_custom_call.1} parent=1 // pred_check
      _
    $region39: #{tpu_custom_call.1} parent=1 // pred_check_branch
      %221 = sbr.rel (0) target = $region41
    $region40: #{tpu_custom_call.1} parent=1 // pred_region
      %223 = dma.done [#allocation4], 32
    $region41: #{tpu_custom_call.1} parent=1 // pred_fallthru
      _
    %224 = vsyncpa [#allocation3], 1
    %225 = vsyncpa [#allocation6], 1
    %226 = vsyncpa [#allocation4], 1

// kernel: tpu_custom_call.1
$region0: #{tpu_custom_call.1}
  #allocation0 [shape = 'u32[]', space=smem, size = 0x4, offset = 0x4, fixed_abs, tag = 'smem constant byte address 0x4 - core index']
  #allocation1 [shape = 'u32[72,128]{1,0:T(1,128)}', space=vmem, size = 0x9000, scoped, tag = 'internal scratch']
  %s0 = inlined_call_operand.hbm [shape: f32[2,32], index: 0, kind: input, shape index: {}]
  %s1 = inlined_call_operand.hbm [shape: bf16[32,128], index: 1, kind: input, shape index: {}]
  %s2 = inlined_call_operand.vmem [shape: f32[1,128], index: 2, kind: input, shape index: {}]
  %s3 = inlined_call_operand.hbm [shape: bf16[128,128], index: 3, kind: input, shape index: {}]
  %s4 = inlined_call_operand.vmem [shape: f32[1,128], index: 4, kind: input, shape index: {}]
  %s5 = inlined_call_operand.hbm [shape: f32[2,128], index: 5, kind: output, shape index: {}]
  %s6 = sld [smem:[#allocation0]]
  $region42: #{tpu_custom_call.1} parent=0
    _
  %s8 = ssub.s32 1, %s6
  %s9 = scalar_select 0, %s8, %s6
  $region1: #{tpu_custom_call.1} parent=0
    #allocation2 [shape = 'u8[1024]{0}', space=vmem, size = 0x400, scoped, tag = 'input window, operand 0, single buffered']
    #allocation3 [shape = 's32[1]{0}', space=sflag, size = 0x4, scoped, tag = 'scoped memory for tpu_custom_call.1']
    #allocation4 [shape = 's32[1]{0}', space=sflag, size = 0x4, scoped, tag = 'scoped memory for tpu_custom_call.1']
    #allocation5 [shape = 'u8[8192]{0}', space=vmem, size = 0x2000, scoped, tag = 'input window, operand 1, single buffered']
    #allocation6 [shape = 's32[1]{0}', space=sflag, size = 0x4, scoped, tag = 'scoped memory for tpu_custom_call.1']
    #allocation7 [shape = 'u8[32768]{0}', space=vmem, size = 0x8000, scoped, tag = 'input window, operand 3, single buffered']
    #allocation8 [shape = 'u8[1024]{0}', space=vmem, size = 0x400, scoped, tag = 'output window, operand 0, single buffered']
    %10 = vsyncpa [#allocation3], 0
    %11 = vsyncpa [#allocation6], 0
    %12 = vsyncpa [#allocation4], 0
    // Predicated region
    $region2: #{tpu_custom_call.1} parent=1 // pred_check
      _
    $region3: #{tpu_custom_call.1} parent=1 // pred_check_branch
      %14 = sbr.rel (0) target = $region5
    $region4: #{tpu_custom_call.1} parent=1 // pred_region
      %16 = vsyncadd [#allocation3], 0
      %s18 = sshll.u32 %s0, 4
      %s19 = int_to_ptr.hbm [resolvable:$true] %s18
      %s20 = sshll.u32 [#allocation2], 4
      %s21 = int_to_ptr.vmem [resolvable:$true] %s20
      %23 = dma.hbm_to_vmem [thread:$0]  %s19, 32, %s21, [#allocation3]
    $region5: #{tpu_custom_call.1} parent=1 // pred_fallthru
      _
    // Predicated region
    $region6: #{tpu_custom_call.1} parent=1 // pred_check
      _
    $region7: #{tpu_custom_call.1} parent=1 // pred_check_branch
      %25 = sbr.rel (0) target = $region9
    $region8: #{tpu_custom_call.1} parent=1 // pred_region
      %27 = vsyncadd [#allocation6], 0
      %s28 = sshll.u32 %s1, 4
      %s29 = int_to_ptr.hbm [resolvable:$true] %s28
      %s30 = sshll.u32 [#allocation5], 4
      %s31 = int_to_ptr.vmem [resolvable:$true] %s30
      %36 = dma.hbm_to_vmem [thread:$0]  %s29, 256, %s31, [#allocation6], 64, 64, 4
    $region9: #{tpu_custom_call.1} parent=1 // pred_fallthru
      _
    // Predicated region
    $region10: #{tpu_custom_call.1} parent=1 // pred_check
      _
    $region11: #{tpu_custom_call.1} parent=1 // pred_check_branch
      %38 = sbr.rel (0) target = $region13
    $region12: #{tpu_custom_call.1} parent=1 // pred_region
      _
    $region13: #{tpu_custom_call.1} parent=1 // pred_fallthru
      _
    // Predicated region
    $region14: #{tpu_custom_call.1} parent=1 // pred_check
      _
    $region15: #{tpu_custom_call.1} parent=1 // pred_check_branch
      %40 = sbr.rel (0) target = $region17
    $region16: #{tpu_custom_call.1} parent=1 // pred_region
      %42 = vsyncadd [#allocation6], 0
      %s43 = sshll.u32 %s3, 4
      %s44 = int_to_ptr.hbm [resolvable:$true] %s43
      %s45 = sshll.u32 [#allocation7], 4
      %s46 = int_to_ptr.vmem [resolvable:$true] %s45
      %51 = dma.hbm_to_vmem [thread:$0]  %s44, 1024, %s46, [#allocation6], 64, 64, 4
    $region17: #{tpu_custom_call.1} parent=1 // pred_fallthru
      _
    // Predicated region
    $region18: #{tpu_custom_call.1} parent=1 // pred_check
      _
    $region19: #{tpu_custom_call.1} parent=1 // pred_check_branch
      %53 = sbr.rel (0) target = $region21
    $region20: #{tpu_custom_call.1} parent=1 // pred_region
      _
    $region21: #{tpu_custom_call.1} parent=1 // pred_fallthru
      _
    // Predicated region
    $region22: #{tpu_custom_call.1} parent=1 // pred_check
      _
    $region23: #{tpu_custom_call.1} parent=1 // pred_check_branch
      %55 = sbr.rel (0) target = $region25
    $region24: #{tpu_custom_call.1} parent=1 // pred_region
      %57 = dma.done [#allocation3], 32
    $region25: #{tpu_custom_call.1} parent=1 // pred_fallthru
      _
    // Predicated region
    $region26: #{tpu_custom_call.1} parent=1 // pred_check
      _
    $region27: #{tpu_custom_call.1} parent=1 // pred_check_branch
      %59 = sbr.rel (0) target = $region29
    $region28: #{tpu_custom_call.1} parent=1 // pred_region
      %61 = dma.done [#allocation6], 256
    $region29: #{tpu_custom_call.1} parent=1 // pred_fallthru
      _
    // Predicated region
    $region30: #{tpu_custom_call.1} parent=1 // pred_check
      _
    $region31: #{tpu_custom_call.1} parent=1 // pred_check_branch
      %63 = sbr.rel (0) target = $region33
    $region32: #{tpu_custom_call.1} parent=1 // pred_region
      %65 = dma.done [#allocation6], 1024
    $region33: #{tpu_custom_call.1} parent=1 // pred_fallthru
      _
    %v67 = vld [vmem:[#allocation2] sm:$0x3]
    %v68 = vpack.c.bf16 %v67, %v67
    %v69 = vld [vmem:[#allocation5] sm:$0xf]
    %v70 = vld [vmem:[#allocation5 + $0x4] sm:$0xf]
    %v71 = vld [vmem:[#allocation5 + $0x8] sm:$0xf]
    %v72 = vld [vmem:[#allocation5 + $0xc] sm:$0xf]
    %v73 = vld [vmem:[%s2] sm:$0x1]
    %v75 = vperm.slane %v73, 0
    %v81 = vunpack.c.l.b16 %v69
    %v82 = vunpack.c.l.b16 %v70
    %v83 = vunpack.c.l.b16 %v71
    %v84 = vunpack.c.l.b16 %v72
    %v85 = vpack.c.b16 %v82, %v81
    %v86 = vpack.c.b16 %v84, %v83
    %vm89 = vcmask 261120
    %v91 = vsel %vm89, %v68, 0
    %93 = vmatpush.bf16.msra.mxu0 0
    %94 = vmatpush.bf16.msra.mxu0 0
    %95 = vmatpush.bf16.msra.mxu0 0
    %96 = vmatpush.bf16.msra.mxu0 0
    %97 = vmatpush.bf16.msra.mxu0 0
    %98 = vmatpush.bf16.msra.mxu0 0
    %99 = vmatpush.bf16.msra.mxu0 %v86
    %100 = vmatpush.bf16.msra.mxu0 %v85
    %101 = vmatmul.bf16.gmra.mxu0 %v91
    %v102 = vpop.f32.mrf.mxu0
    %v103 = vadd.f32 %v75, %v102
    %v104 = vpop.f32.mrf.mxu0
    %105 = vdwg.mxu0
    %v106 = vxor.u32 %v103, 2147483648
    %v107 = vmul.f32 %v106, 1.442695
    %v108 = vpow.pop %v107
    %v109 = vadd.f32 %v108, 1.0
    %v110 = vrcp.pop %v109
    %v111 = vmul.f32 %v109, %v110
    %v112 = vsub.f32 1.0, %v111
    %v113 = vmul.f32 %v110, %v112
    %v114 = vadd.f32 %v110, %v113
    %vm115 = vweird.f32 %v109
    %vm116 = vweird.f32 %v110
    %vm117 = vmor %vm115, %vm116
    %v118 = vsel %vm117, %v110, %v114
    %v119 = vand.u32 2147483647, %v109
    %vm120 = vcmp.eq.f32.partialorder %v119, 8.507059e+37
    %v121 = vand.u32 %v109, 2147483648
    %v122 = vor.u32 1.1754944e-38, %v121
    %v123 = vsel %vm120, %v122, %v118
    %v124 = vmul.f32 1.0, %v123
    %v125 = vmul.f32 %v103, %v124
    %v126 = vpack.c.bf16 %v125, %v125
    %v127 = vld [vmem:[#allocation7] sm:$0xf]
    %v128 = vld [vmem:[#allocation7 + $0x4] sm:$0xf]
    %v129 = vld [vmem:[#allocation7 + $0x8] sm:$0xf]
    %v130 = vld [vmem:[#allocation7 + $0xc] sm:$0xf]
    %v131 = vld [vmem:[#allocation7 + $0x10] sm:$0xf]
    %v132 = vld [vmem:[#allocation7 + $0x14] sm:$0xf]
    %v133 = vld [vmem:[#allocation7 + $0x18] sm:$0xf]
    %v134 = vld [vmem:[#allocation7 + $0x1c] sm:$0xf]
    %v135 = vld [vmem:[#allocation7 + $0x20] sm:$0xf]
    %v136 = vld [vmem:[#allocation7 + $0x24] sm:$0xf]
    %v137 = vld [vmem:[#allocation7 + $0x28] sm:$0xf]
    %v138 = vld [vmem:[#allocation7 + $0x2c] sm:$0xf]
    %v139 = vld [vmem:[#allocation7 + $0x30] sm:$0xf]
    %v140 = vld [vmem:[#allocation7 + $0x34] sm:$0xf]
    %v141 = vld [vmem:[#allocation7 + $0x38] sm:$0xf]
    %v142 = vld [vmem:[#allocation7 + $0x3c] sm:$0xf]
    %v143 = vld [vmem:[%s4] sm:$0x1]
    %v145 = vperm.slane %v143, 0
    %v163 = vunpack.c.l.b16 %v127
    %v164 = vunpack.c.l.b16 %v128
    %v165 = vunpack.c.l.b16 %v129
    %v166 = vunpack.c.l.b16 %v130
    %v167 = vunpack.c.l.b16 %v131
    %v168 = vunpack.c.l.b16 %v132
    %v169 = vunpack.c.l.b16 %v133
    %v170 = vunpack.c.l.b16 %v134
    %v171 = vunpack.c.l.b16 %v135
    %v172 = vunpack.c.l.b16 %v136
    %v173 = vunpack.c.l.b16 %v137
    %v174 = vunpack.c.l.b16 %v138
    %v175 = vunpack.c.l.b16 %v139
    %v176 = vunpack.c.l.b16 %v140
    %v177 = vunpack.c.l.b16 %v141
    %v178 = vunpack.c.l.b16 %v142
    %v179 = vpack.c.b16 %v164, %v163
    %v180 = vpack.c.b16 %v166, %v165
    %v181 = vpack.c.b16 %v168, %v167
    %v182 = vpack.c.b16 %v170, %v169
    %v183 = vpack.c.b16 %v172, %v171
    %v184 = vpack.c.b16 %v174, %v173
    %v185 = vpack.c.b16 %v176, %v175
    %v186 = vpack.c.b16 %v178, %v177
    %195 = vmatpush.bf16.msra.mxu0 %v186
    %196 = vmatpush.bf16.msra.mxu0 %v185
    %197 = vmatpush.bf16.msra.mxu0 %v184
    %198 = vmatpush.bf16.msra.mxu0 %v183
    %199 = vmatpush.bf16.msra.mxu0 %v182
    %200 = vmatpush.bf16.msra.mxu0 %v181
    %201 = vmatpush.bf16.msra.mxu0 %v180
    %202 = vmatpush.bf16.msra.mxu0 %v179
    %203 = vmatmul.bf16.gmra.mxu0 %v126
    %v204 = vpop.f32.mrf.mxu0
    %v205 = vadd.f32 %v145, %v204
    %v206 = vpop.f32.mrf.mxu0
    %207 = vdwg.mxu0
    %208 = vst [vmem:[#allocation8] sm:$0x3] %v205
    // Predicated region
    $region34: #{tpu_custom_call.1} parent=1 // pred_check
      _
    $region35: #{tpu_custom_call.1} parent=1 // pred_check_branch
      %210 = sbr.rel (0) target = $region37
    $region36: #{tpu_custom_call.1} parent=1 // pred_region
      %212 = vsyncadd [#allocation4], 0
      %s214 = sshll.u32 [#allocation8], 4
      %s215 = int_to_ptr.vmem [resolvable:$true] %s214
      %s216 = sshll.u32 %s5, 4
      %s217 = int_to_ptr.hbm [resolvable:$true] %s216
      %219 = dma.vmem_to_hbm [thread:$0]  %s215, 32, %s217, [#allocation4]
    $region37: #{tpu_custom_call.1} parent=1 // pred_fallthru
      _
    // Predicated region
    $region38: #{tpu_custom_call.1} parent=1 // pred_check
      _
    $region39: #{tpu_custom_call.1} parent=1 // pred_check_branch
      %221 = sbr.rel (0) target = $region41
    $region40: #{tpu_custom_call.1} parent=1 // pred_region
      %223 = dma.done [#allocation4], 32
    $region41: #{tpu_custom_call.1} parent=1 // pred_fallthru
      _
    %224 = vsyncpa [#allocation3], 1
    %225 = vsyncpa [#allocation6], 1
    %226 = vsyncpa [#allocation4], 1

</llo_original>
